<compile_context>
chip_gen: v5e
topology: v5e:2x2
jax: 0.10.0
libtpu: 0.0.40
codegen_flags: <defaults>
</compile_context>

<pallas_src>
import math
from functools import partial

import jax
import jax.numpy as jnp
from jax import lax
from jax.experimental import pallas as pl
from jax.experimental.pallas import tpu as pltpu


# ---------------------------------------------------------------------------
# Kernels
# ---------------------------------------------------------------------------

def _proj_kernel(x_ref, m_ref, wq_ref, bq_ref, wk_ref, bk_ref, q_ref, k_ref, *,
                 scale, fold_mask):
    """Row-tile projection: Q = (X Wq + bq) * scale [* m], K = (X Wk + bk) [* m].

    x_ref : (TR, H) compute-dtype row tile of hidden_states
    m_ref : (TR, 1) f32 row mask (only used when fold_mask)
    wq/wk : (H, H) compute dtype, (in, out) layout; bq/bk : (1, H) f32
    q_ref/k_ref : (TR, H) compute-dtype outputs
    """
    x = x_ref[...]
    q = jnp.dot(x, wq_ref[...], preferred_element_type=jnp.float32)
    q = (q + bq_ref[...]) * scale                     # scale > 0: max/min safe
    k = jnp.dot(x, wk_ref[...], preferred_element_type=jnp.float32)
    k = k + bk_ref[...]
    if fold_mask:                                      # exact for 'mean' (linear)
        m = m_ref[...]
        q = q * m
        k = k * m
    q_ref[...] = q.astype(q_ref.dtype)
    k_ref[...] = k.astype(k_ref.dtype)


def _score_mean_kernel(q_ref, k_ref, o_ref):
    """'mean' score tile: sum over heads of Q_h K_h^T == full-H Q K^T.

    q_ref : (TQ, H), k_ref : (TK, H) projected (scale + mask already folded).
    o_ref : (TQ, TK)
    """
    contract_last = (((1,), (1,)), ((), ()))           # contract last dims, no .T
    acc = lax.dot_general(q_ref[...], k_ref[...], contract_last,
                          preferred_element_type=jnp.float32)
    o_ref[...] = acc.astype(o_ref.dtype)


def _score_headagg_kernel(q_ref, k_ref, mq_ref, mk_ref, o_ref, *,
                          num_heads, aggregation):
    """'max'/'min' score tile with head-major layout.

    q_ref : (nh, TQ, hd), k_ref : (nh, TK, hd)  (leading head axis -> free slice)
    mq_ref: (TQ, 1), mk_ref: (1, TK) f32 masks (applied post-aggregation,
            exactly like the torch module, so arbitrary-sign masks stay correct)
    o_ref : (TQ, TK)
    """
    contract_last = (((1,), (1,)), ((), ()))
    acc = None
    for h in range(num_heads):
        s = lax.dot_general(q_ref[h], k_ref[h], contract_last,
                            preferred_element_type=jnp.float32)
        if acc is None:
            acc = s
        elif aggregation == 'max':
            acc = jnp.maximum(acc, s)
        else:  # 'min'
            acc = jnp.minimum(acc, s)
    o_ref[...] = (acc * mq_ref[...] * mk_ref[...]).astype(o_ref.dtype)


# ---------------------------------------------------------------------------
# Tiling helpers
# ---------------------------------------------------------------------------

def _round_up(x, m):
    return ((x + m - 1) // m) * m


def _pick_tile(s, target):
    """Largest multiple of 128 dividing s that is <= target (s multiple of 128)."""
    t = max(128, (min(target, s) // 128) * 128)
    while s % t != 0:
        t -= 128
    return t


def _choose_tiles(S, tile_target):
    """Returns (S_pad, tile). Small S -> single full block (no padding needed)."""
    if S <= tile_target:
        return S, S
    S_pad = _round_up(S, 128)
    return S_pad, _pick_tile(S_pad, tile_target)


def _generation_defaults(H, tile_target, vmem_limit_bytes):
    """Generation-aware tile target / VMEM limit from hardware info."""
    try:
        info = pltpu.get_tpu_info()
        vmem_cap = getattr(info, 'vmem_capacity_bytes', 64 * 1024 * 1024)
    except Exception:
        vmem_cap = 64 * 1024 * 1024                    # conservative (v7x-sized)
    if tile_target is None:
        if vmem_cap >= 96 * 1024 * 1024:               # v5e / v6e: 128 MiB VMEM
            tile_target = 1024
        else:                                          # v7x: 64 MiB per TC
            tile_target = 512 if H < 2048 else 256
    if vmem_limit_bytes is None:
        vmem_limit_bytes = min(int(vmem_cap * 3 // 4), 96 * 1024 * 1024)
    return tile_target, vmem_limit_bytes


# ---------------------------------------------------------------------------
# Wrapper
# ---------------------------------------------------------------------------

def link_att_forward(hidden_states, attention_mask, wq, bq, wk, bk, *,
                     num_heads, sqrtatt=True, aggregation='mean',
                     compute_dtype=jnp.bfloat16, out_dtype=jnp.float32,
                     tile_target=None, vmem_limit_bytes=None):
    """hidden_states: (B, S, H); attention_mask: (B, S).
    wq, wk: (H, H) torch-style (out, in); bq, bk: (H,). Returns (B, S, S) out_dtype.
    out_dtype=jnp.bfloat16 halves the (B,S,S) writeback on memory-bound v5e/v6e."""
    B, S, H = hidden_states.shape
    assert H % num_heads == 0
    assert aggregation in ('mean', 'max', 'min')
    head_dim = H // num_heads

    tile_target, vmem_limit_bytes = _generation_defaults(
        H, tile_target, vmem_limit_bytes)
    S_pad, tile = _choose_tiles(S, tile_target)
    tq = tk = tr = tile
    # NOTE(v7x): with 2 TCs, pick tile so B * (S_pad // tq) is even for load
    # balance; left as-is since the parallel extent is usually large.

    if S_pad != S:
        pad = S_pad - S
        hidden_states = jnp.pad(hidden_states, ((0, 0), (0, pad), (0, 0)))
        attention_mask = jnp.pad(attention_mask, ((0, 0), (0, pad)))

    scale = (1.0 / math.sqrt(head_dim)) if sqrtatt else 1.0
    if aggregation == 'mean':
        scale = scale / num_heads
    fold_mask = (aggregation == 'mean')                # exact only for linear agg

    x = hidden_states.astype(compute_dtype)
    wq_t = wq.T.astype(compute_dtype)                  # (in, out): y = x @ W + b
    wk_t = wk.T.astype(compute_dtype)
    bq2 = bq.reshape(1, H).astype(jnp.float32)
    bk2 = bk.reshape(1, H).astype(jnp.float32)
    m_f32 = attention_mask.astype(jnp.float32)
    mask_rows = m_f32.reshape(B, S_pad, 1)

    # ---- 1) projection: Q, K computed exactly once per row ------------------
    # TODO(synk): tile the output-H dim of this kernel for very large H on v7x
    # (the two (H,H) weight blocks are double-buffered in VMEM).
    q_proj, k_proj = pl.pallas_call(
        partial(_proj_kernel, scale=scale, fold_mask=fold_mask),
        out_shape=(jax.ShapeDtypeStruct((B, S_pad, H), compute_dtype),
                   jax.ShapeDtypeStruct((B, S_pad, H), compute_dtype)),
        grid_spec=pltpu.PrefetchScalarGridSpec(
            num_scalar_prefetch=0,
            grid=(B, S_pad // tr),
            in_specs=[
                pl.BlockSpec((None, tr, H), lambda b, r: (b, r, 0)),   # x rows
                pl.BlockSpec((None, tr, 1), lambda b, r: (b, r, 0)),   # row mask
                pl.BlockSpec((H, H), lambda b, r: (0, 0)),             # Wq^T
                pl.BlockSpec((1, H), lambda b, r: (0, 0)),             # bq
                pl.BlockSpec((H, H), lambda b, r: (0, 0)),             # Wk^T
                pl.BlockSpec((1, H), lambda b, r: (0, 0)),             # bk
            ],
            out_specs=(pl.BlockSpec((None, tr, H), lambda b, r: (b, r, 0)),
                       pl.BlockSpec((None, tr, H), lambda b, r: (b, r, 0))),
        ),
        compiler_params=pltpu.CompilerParams(
            dimension_semantics=("parallel", "parallel"),
            vmem_limit_bytes=vmem_limit_bytes,
        ),
    )(x, mask_rows, wq_t, bq2, wk_t, bk2)

    # ---- 2) tiled (TQ, TK) score kernel -------------------------------------
    grid = (B, S_pad // tq, S_pad // tk)
    cparams = pltpu.CompilerParams(
        dimension_semantics=("parallel", "parallel", "parallel"),
        vmem_limit_bytes=vmem_limit_bytes,
    )

    if aggregation == 'mean':
        out = pl.pallas_call(
            _score_mean_kernel,
            out_shape=jax.ShapeDtypeStruct((B, S_pad, S_pad), out_dtype),
            grid_spec=pltpu.PrefetchScalarGridSpec(
                num_scalar_prefetch=0,
                grid=grid,
                in_specs=[
                    pl.BlockSpec((None, tq, H), lambda b, qi, kj: (b, qi, 0)),
                    pl.BlockSpec((None, tk, H), lambda b, qi, kj: (b, kj, 0)),
                ],
                out_specs=pl.BlockSpec((None, tq, tk),
                                       lambda b, qi, kj: (b, qi, kj)),
            ),
            compiler_params=cparams,
        )(q_proj, k_proj)
    else:
        # Head-major layout: leading head axis -> free per-head slicing in-kernel.
        q_heads = q_proj.reshape(B, S_pad, num_heads, head_dim).transpose(0, 2, 1, 3)
        k_heads = k_proj.reshape(B, S_pad, num_heads, head_dim).transpose(0, 2, 1, 3)
        mask_q = m_f32.reshape(B, S_pad, 1)
        mask_k = m_f32.reshape(B, 1, S_pad)
        out = pl.pallas_call(
            partial(_score_headagg_kernel, num_heads=num_heads,
                    aggregation=aggregation),
            out_shape=jax.ShapeDtypeStruct((B, S_pad, S_pad), out_dtype),
            grid_spec=pltpu.PrefetchScalarGridSpec(
                num_scalar_prefetch=0,
                grid=grid,
                in_specs=[
                    pl.BlockSpec((None, num_heads, tq, head_dim),
                                 lambda b, qi, kj: (b, 0, qi, 0)),
                    pl.BlockSpec((None, num_heads, tk, head_dim),
                                 lambda b, qi, kj: (b, 0, kj, 0)),
                    pl.BlockSpec((None, tq, 1), lambda b, qi, kj: (b, qi, 0)),
                    pl.BlockSpec((None, 1, tk), lambda b, qi, kj: (b, 0, kj)),
                ],
                out_specs=pl.BlockSpec((None, tq, tk),
                                       lambda b, qi, kj: (b, qi, kj)),
            ),
            compiler_params=cparams,
        )(q_heads, k_heads, mask_q, mask_k)

    if S_pad != S:
        out = out[:, :S, :S]
    return out


# ---------------------------------------------------------------------------
# Pure-JAX reference
# ---------------------------------------------------------------------------

def _reference(hidden_states, attention_mask, wq, bq, wk, bk,
               *, num_heads, sqrtatt, aggregation):
    B, S, H = hidden_states.shape
    hd = H // num_heads
    q = hidden_states @ wq.T + bq
    k = hidden_states @ wk.T + bk
    q = q.reshape(B, S, num_heads, hd).transpose(0, 2, 1, 3)
    k = k.reshape(B, S, num_heads, hd).transpose(0, 2, 1, 3)
    scores = jnp.einsum('bhqd,bhkd->bhqk', q, k)
    if sqrtatt:
        scores = scores / math.sqrt(hd)
    if aggregation == 'mean':
        scores = scores.mean(axis=1)
    elif aggregation == 'max':
        scores = scores.max(axis=1)
    else:
        scores = scores.min(axis=1)
    scores = scores * attention_mask[:, None, :]
    scores = scores * attention_mask[:, :, None]
    return scores


if __name__ == "__main__":
    key = jax.random.PRNGKey(0)

    # ---- small shapes consistent with the module's forward ------------------
    B, S, H = 2, 8, 32
    num_heads = 4
    sqrtatt = True

    k_x, k_m, k_wq, k_bq, k_wk, k_bk = jax.random.split(key, 6)
    hidden_states = jax.random.normal(k_x, (B, S, H), dtype=jnp.float32)
    attention_mask = (jax.random.uniform(k_m, (B, S)) > 0.2).astype(jnp.float32)

    bound = 1.0 / math.sqrt(H)
    wq = jax.random.uniform(k_wq, (H, H), minval=-bound, maxval=bound, dtype=jnp.float32)
    bq = jax.random.uniform(k_bq, (H,), minval=-bound, maxval=bound, dtype=jnp.float32)
    wk = jax.random.uniform(k_wk, (H, H), minval=-bound, maxval=bound, dtype=jnp.float32)
    bk = jax.random.uniform(k_bk, (H,), minval=-bound, maxval=bound, dtype=jnp.float32)

    # Algorithm validation in f32 (tight tolerance) for all aggregation modes.
    for aggregation in ('mean', 'max', 'min'):
        out = link_att_forward(hidden_states, attention_mask, wq, bq, wk, bk,
                               num_heads=num_heads, sqrtatt=sqrtatt,
                               aggregation=aggregation,
                               compute_dtype=jnp.float32)
        out = jax.block_until_ready(out)
        ref = _reference(hidden_states, attention_mask, wq, bq, wk, bk,
                         num_heads=num_heads, sqrtatt=sqrtatt,
                         aggregation=aggregation)
        assert out.shape == (B, S, S)
        assert jnp.allclose(out, ref, atol=1e-4, rtol=1e-4), \
            f"f32 mismatch vs reference (aggregation={aggregation})"

    # Performance path: bf16 MXU operands with f32 accumulation (looser tol),
    # covering both the 'mean' (full-H) and 'max' (per-head) paths.
    for aggregation in ('mean', 'max'):
        out_bf16 = link_att_forward(hidden_states, attention_mask, wq, bq, wk, bk,
                                    num_heads=num_heads, sqrtatt=sqrtatt,
                                    aggregation=aggregation,
                                    compute_dtype=jnp.bfloat16)
        out_bf16 = jax.block_until_ready(out_bf16)
        ref = _reference(hidden_states, attention_mask, wq, bq, wk, bk,
                         num_heads=num_heads, sqrtatt=sqrtatt,
                         aggregation=aggregation)
        assert jnp.allclose(out_bf16, ref, atol=5e-2, rtol=5e-2), \
            f"bf16 mismatch vs reference (aggregation={aggregation})"

    # Padded + tiled path: S not a multiple of 128, forced small tile_target so
    # the wrapper pads S -> 256 and tiles the (S, S) output with 128x128 blocks.
    B2, S2, H2 = 1, 200, 32
    k_x2, k_m2 = jax.random.split(jax.random.PRNGKey(1), 2)
    hs2 = jax.random.normal(k_x2, (B2, S2, H2), dtype=jnp.float32)
    am2 = (jax.random.uniform(k_m2, (B2, S2)) > 0.2).astype(jnp.float32)
    for aggregation in ('mean', 'max'):
        out2 = link_att_forward(hs2, am2, wq, bq, wk, bk,
                                num_heads=num_heads, sqrtatt=sqrtatt,
                                aggregation=aggregation,
                                compute_dtype=jnp.float32, tile_target=128)
        out2 = jax.block_until_ready(out2)
        ref2 = _reference(hs2, am2, wq, bq, wk, bk,
                          num_heads=num_heads, sqrtatt=sqrtatt,
                          aggregation=aggregation)
        assert out2.shape == (B2, S2, S2)
        assert jnp.allclose(out2, ref2, atol=1e-4, rtol=1e-4), \
            f"padded/tiled f32 mismatch vs reference (aggregation={aggregation})"

    print("KERNEL_OK")
</pallas_src>

<mosaic_0001>
module attributes {stable_mosaic.version = 11 : i64} {
  func.func @_proj_kernel(%arg0: i32, %arg1: i32, %arg2: memref<1x8x32xf32, #tpu.memory_space<vmem>>, %arg3: memref<1x8x1xf32, #tpu.memory_space<vmem>>, %arg4: memref<32x32xf32, #tpu.memory_space<vmem>>, %arg5: memref<1x32xf32, #tpu.memory_space<vmem>>, %arg6: memref<32x32xf32, #tpu.memory_space<vmem>>, %arg7: memref<1x32xf32, #tpu.memory_space<vmem>>, %arg8: memref<1x8x32xf32, #tpu.memory_space<vmem>>, %arg9: memref<1x8x32xf32, #tpu.memory_space<vmem>>) attributes {dimension_semantics = [#tpu.dimension_semantics<parallel>, #tpu.dimension_semantics<parallel>], iteration_bounds = array<i64: 2, 1>, scalar_prefetch = 0 : i64, scratch_operands = 0 : i64, tpu.core_type = #tpu.core_type<tc>, window_params = [{transform_indices = @transform_0, window_bounds = array<i64: 1, 8, 32>}, {transform_indices = @transform_1, window_bounds = array<i64: 1, 8, 1>}, {pipeline_mode = #tpu.pipeline_mode<synchronous>, transform_indices = @transform_2, window_bounds = array<i64: 32, 32>}, {pipeline_mode = #tpu.pipeline_mode<synchronous>, transform_indices = @transform_3, window_bounds = array<i64: 1, 32>}, {pipeline_mode = #tpu.pipeline_mode<synchronous>, transform_indices = @transform_4, window_bounds = array<i64: 32, 32>}, {pipeline_mode = #tpu.pipeline_mode<synchronous>, transform_indices = @transform_5, window_bounds = array<i64: 1, 32>}, {transform_indices = @transform_6, window_bounds = array<i64: 1, 8, 32>}, {transform_indices = @transform_7, window_bounds = array<i64: 1, 8, 32>}]} {
    %c0 = arith.constant 0 : index
    %c0_0 = arith.constant 0 : index
    %c0_1 = arith.constant 0 : index
    %0 = vector.load %arg2[%c0, %c0_0, %c0_1] : memref<1x8x32xf32, #tpu.memory_space<vmem>>, vector<1x8x32xf32>
    %1 = vector.shape_cast %0 : vector<1x8x32xf32> to vector<8x32xf32>
    %c0_2 = arith.constant 0 : index
    %c0_3 = arith.constant 0 : index
    %2 = vector.load %arg4[%c0_2, %c0_3] : memref<32x32xf32, #tpu.memory_space<vmem>>, vector<32x32xf32>
    %cst = arith.constant dense<0.000000e+00> : vector<8x32xf32>
    %3 = tpu.matmul %1, %2, %cst {dimension_numbers = #tpu.dot_dimension_numbers<[1], [0], [0], [1], [0, 0, 1, 1], [], []>} : vector<8x32xf32>, vector<32x32xf32>, vector<8x32xf32> -> vector<8x32xf32>
    %c0_4 = arith.constant 0 : index
    %c0_5 = arith.constant 0 : index
    %4 = vector.load %arg5[%c0_4, %c0_5] : memref<1x32xf32, #tpu.memory_space<vmem>>, vector<1x32xf32>
    %5 = vector.broadcast %4 : vector<1x32xf32> to vector<8x32xf32>
    %6 = arith.addf %3, %5 : vector<8x32xf32>
    %cst_6 = arith.constant 0.0883883461 : f32
    %7 = vector.broadcast %cst_6 : f32 to vector<8x32xf32>
    %8 = arith.mulf %6, %7 : vector<8x32xf32>
    %c0_7 = arith.constant 0 : index
    %c0_8 = arith.constant 0 : index
    %9 = vector.load %arg6[%c0_7, %c0_8] : memref<32x32xf32, #tpu.memory_space<vmem>>, vector<32x32xf32>
    %cst_9 = arith.constant dense<0.000000e+00> : vector<8x32xf32>
    %10 = tpu.matmul %1, %9, %cst_9 {dimension_numbers = #tpu.dot_dimension_numbers<[1], [0], [0], [1], [0, 0, 1, 1], [], []>} : vector<8x32xf32>, vector<32x32xf32>, vector<8x32xf32> -> vector<8x32xf32>
    %c0_10 = arith.constant 0 : index
    %c0_11 = arith.constant 0 : index
    %11 = vector.load %arg7[%c0_10, %c0_11] : memref<1x32xf32, #tpu.memory_space<vmem>>, vector<1x32xf32>
    %12 = vector.broadcast %11 : vector<1x32xf32> to vector<8x32xf32>
    %13 = arith.addf %10, %12 : vector<8x32xf32>
    %c0_12 = arith.constant 0 : index
    %c0_13 = arith.constant 0 : index
    %c0_14 = arith.constant 0 : index
    %14 = vector.load %arg3[%c0_12, %c0_13, %c0_14] : memref<1x8x1xf32, #tpu.memory_space<vmem>>, vector<1x8x1xf32>
    %15 = vector.shape_cast %14 : vector<1x8x1xf32> to vector<8x1xf32>
    %16 = vector.broadcast %15 : vector<8x1xf32> to vector<8x32xf32>
    %17 = arith.mulf %8, %16 : vector<8x32xf32>
    %18 = vector.broadcast %15 : vector<8x1xf32> to vector<8x32xf32>
    %19 = arith.mulf %13, %18 : vector<8x32xf32>
    %c0_15 = arith.constant 0 : index
    %c0_16 = arith.constant 0 : index
    %c0_17 = arith.constant 0 : index
    %20 = vector.load %arg8[%c0_15, %c0_16, %c0_17] : memref<1x8x32xf32, #tpu.memory_space<vmem>>, vector<1x8x32xf32>
    %21 = vector.shape_cast %20 : vector<1x8x32xf32> to vector<8x32xf32>
    %22 = vector.shape_cast %17 : vector<8x32xf32> to vector<1x8x32xf32>
    tpu.vector_store %arg8[%c0_15, %c0_16, %c0_17], %22 {strides = array<i32>} : memref<1x8x32xf32, #tpu.memory_space<vmem>>, vector<1x8x32xf32>,
    %c0_18 = arith.constant 0 : index
    %c0_19 = arith.constant 0 : index
    %c0_20 = arith.constant 0 : index
    %23 = vector.load %arg9[%c0_18, %c0_19, %c0_20] : memref<1x8x32xf32, #tpu.memory_space<vmem>>, vector<1x8x32xf32>
    %24 = vector.shape_cast %23 : vector<1x8x32xf32> to vector<8x32xf32>
    %25 = vector.shape_cast %19 : vector<8x32xf32> to vector<1x8x32xf32>
    tpu.vector_store %arg9[%c0_18, %c0_19, %c0_20], %25 {strides = array<i32>} : memref<1x8x32xf32, #tpu.memory_space<vmem>>, vector<1x8x32xf32>,
    return
  }
  func.func @transform_0(%arg0: i32, %arg1: i32) -> (i32, i32, i32) {
    %c0_i32 = arith.constant 0 : i32
    %c0_i32_0 = arith.constant 0 : i32
    return %arg0, %arg1, %c0_i32 : i32, i32, i32
  }
  func.func @transform_1(%arg0: i32, %arg1: i32) -> (i32, i32, i32) {
    %c0_i32 = arith.constant 0 : i32
    %c0_i32_0 = arith.constant 0 : i32
    return %arg0, %arg1, %c0_i32 : i32, i32, i32
  }
  func.func @transform_2(%arg0: i32, %arg1: i32) -> (i32, i32) {
    %c0_i32 = arith.constant 0 : i32
    %c0_i32_0 = arith.constant 0 : i32
    %c0_i32_1 = arith.constant 0 : i32
    return %c0_i32, %c0_i32_0 : i32, i32
  }
  func.func @transform_3(%arg0: i32, %arg1: i32) -> (i32, i32) {
    %c0_i32 = arith.constant 0 : i32
    %c0_i32_0 = arith.constant 0 : i32
    %c0_i32_1 = arith.constant 0 : i32
    return %c0_i32, %c0_i32_0 : i32, i32
  }
  func.func @transform_4(%arg0: i32, %arg1: i32) -> (i32, i32) {
    %c0_i32 = arith.constant 0 : i32
    %c0_i32_0 = arith.constant 0 : i32
    %c0_i32_1 = arith.constant 0 : i32
    return %c0_i32, %c0_i32_0 : i32, i32
  }
  func.func @transform_5(%arg0: i32, %arg1: i32) -> (i32, i32) {
    %c0_i32 = arith.constant 0 : i32
    %c0_i32_0 = arith.constant 0 : i32
    %c0_i32_1 = arith.constant 0 : i32
    return %c0_i32, %c0_i32_0 : i32, i32
  }
  func.func @transform_6(%arg0: i32, %arg1: i32) -> (i32, i32, i32) {
    %c0_i32 = arith.constant 0 : i32
    %c0_i32_0 = arith.constant 0 : i32
    return %arg0, %arg1, %c0_i32 : i32, i32, i32
  }
  func.func @transform_7(%arg0: i32, %arg1: i32) -> (i32, i32, i32) {
    %c0_i32 = arith.constant 0 : i32
    %c0_i32_0 = arith.constant 0 : i32
    return %arg0, %arg1, %c0_i32 : i32, i32, i32
  }
}

</mosaic_0001>

<llo_original>
// kernel: tpu_custom_call.1
$region0: #{tpu_custom_call.1}
  #allocation0 [shape = 'u32[]', space=smem, size = 0x4, offset = 0x4, fixed_abs, tag = 'smem constant byte address 0x4 - core index']
  #allocation1 [shape = 'u32[72,128]{1,0:T(1,128)}', space=vmem, size = 0x9000, scoped, tag = 'internal scratch']
  %s0 = inlined_call_operand.vmem [shape: f32[2,8,32], index: 0, kind: input, shape index: {}]
  %s1 = inlined_call_operand.vmem [shape: f32[2,8,1], index: 1, kind: input, shape index: {}]
  %s2 = inlined_call_operand.hbm [shape: f32[32,32], index: 2, kind: input, shape index: {}]
  %s3 = inlined_call_operand.vmem [shape: f32[1,32], index: 3, kind: input, shape index: {}]
  %s4 = inlined_call_operand.hbm [shape: f32[32,32], index: 4, kind: input, shape index: {}]
  %s5 = inlined_call_operand.vmem [shape: f32[1,32], index: 5, kind: input, shape index: {}]
  %s6 = inlined_call_operand.hbm [shape: f32[2,8,32], index: 6, kind: output, shape index: {0}]
  %s7 = inlined_call_operand.hbm [shape: f32[2,8,32], index: 7, kind: output, shape index: {1}]
  %8 = xla_tuple %s6, %s7
  %s9 = sld [smem:[#allocation0]]
  $region73: #{tpu_custom_call.1} parent=0
    _
  %s11 = ssub.s32 1, %s9
  %s12 = scalar_select 0, %s11, %s9
  $region1: #{tpu_custom_call.1} parent=0
    #allocation2 [shape = 'u8[16384]{0}', space=vmem, size = 0x4000, scoped, tag = 'input window, operand 2, single buffered']
    #allocation3 [shape = 's32[2]{0}', space=sflag, size = 0x8, scoped, tag = 'scoped memory for tpu_custom_call.1']
    #allocation4 [shape = 's32[2]{0}', space=sflag, size = 0x8, scoped, tag = 'scoped memory for tpu_custom_call.1']
    #allocation5 [shape = 'u8[16384]{0}', space=vmem, size = 0x4000, scoped, tag = 'input window, operand 4, single buffered']
    #allocation6 [shape = 's32[1]{0}', space=sflag, size = 0x4, scoped, tag = 'scoped memory for tpu_custom_call.1']
    #allocation7 [shape = 'u8[8192]{0}', space=vmem, size = 0x2000, scoped, tag = 'output window, operand 0']
    #allocation8 [shape = 'u8[8192]{0}', space=vmem, size = 0x2000, scoped, tag = 'output window, operand 1']
    #allocation9 [shape = 's32[2]{0}', space=sflag, size = 0x8, scoped, tag = 'scoped memory for tpu_custom_call.1']
    %13 = vsyncpa [#allocation3], 0
    %14 = vsyncpa [#allocation6], 0
    %15 = vsyncpa [#allocation4], 0
    %s16 = scalar_lea.sflag [#allocation4], 1
    %17 = vsyncpa %s16, 0
    %18 = vsyncpa [#allocation9], 0
    %s19 = scalar_lea.sflag [#allocation9], 1
    %20 = vsyncpa %s19, 0
    loop: start=0, step=1, limit=4
    $region2: #{tpu_custom_call.1} parent=1 // loop_pre_header
      _
    $region3: #{tpu_custom_call.1} parent=1 // loop_header
      %s22 = sphi 0, %s26
      %p23 = scmp.ge.s32.totalorder %s22, 4
      %s29 = sphi 0, %s41
      %s30 = sphi 0, %s37
      %s31 = sphi 0, %s29
      %s32 = sphi 0, %s30
      %s33 = sphi 0, %s31
      %s34 = sphi 0, %s32
      %s46 = sphi 0, %s48
      %s49 = sphi 0, %s46
      %s50 = sphi 0, %s49
      %s66 = sphi 0, %s50
      %s74 = sphi 0, %s76
      %s77 = sphi 0, %s74
      %s78 = sphi 0, %s77
      %s94 = sphi 0, %s78
      %s98 = sphi 0, %s98
      %s100 = sphi 0, %s98
      %s101 = sphi 0, %s100
      %s115 = sphi 0, %s101
      %s119 = sphi 0, %s119
      %s121 = sphi 0, %s119
      %s122 = sphi 0, %s121
      %s136 = sphi 0, %s122
      %s140 = sphi 0, %s140
      %s142 = sphi 0, %s140
      %s143 = sphi 0, %s142
      %s157 = sphi 0, %s143
      %s161 = sphi 0, %s161
      %s163 = sphi 0, %s161
      %s164 = sphi 0, %s163
      %s178 = sphi 0, %s164
      %s186 = sphi 0, %s188
      %s189 = sphi 0, %s186
      %s190 = sphi 0, %s189
      %s206 = sphi 0, %s190
      %s214 = sphi 0, %s216
      %s217 = sphi 0, %s214
      %s218 = sphi 0, %s217
      %s234 = sphi 0, %s218
    $region4: #{tpu_custom_call.1} parent=1 // loop_header_branch
      %25 = sbr.rel (%p23) target = $region8
    $region5: #{tpu_custom_call.1} parent=1 // loop_body
      %s27 = ssub.s32 %s22, 1
      %s28 = ssub.s32 %s22, 2
      %s35 = sadd.s32 1, %s30
      %p36 = scmp.ge.s32.totalorder %s35, 1
      %s37 = scalar_select %p36, 0, %s35
      %s38 = sadd.s32 1, %s29
      %s39 = scalar_select %p36, %s38, %s29
      %p40 = scmp.ge.s32.totalorder %s39, 2
      %s41 = scalar_select %p40, 0, %s39
      %s42 = ssub.s32 %s29, %s41
      %s43 = ssub.s32 %s30, %s37
      %s44 = sor.u32 %s42, %s43
      %p45 = scmp.eq.s32.totalorder %s44, 0
      %s47 = sadd.s32 %s46, 1
      %s48 = scalar_select %p45, %s46, %s47
      %p51 = pneg %p45
      %p52 = scmp.eq.s32.totalorder %s22, 1
      %p53 = por %p51, %p52
      %p54 = scmp.ne.s32.totalorder %s46, %s49
      %p55 = scmp.eq.s32.totalorder %s22, 0
      %p56 = por %p54, %p55
      %p57 = scmp.ne.s32.totalorder %s46, %s49
      %p58 = scmp.eq.s32.totalorder %s27, 1
      %p59 = por %p57, %p58
      %p60 = scmp.ne.s32.totalorder %s49, %s50
      %p61 = scmp.eq.s32.totalorder %s27, 0
      %p62 = por %p60, %p61
      %p63 = scmp.ne.s32.totalorder %s49, %s50
      %p64 = scmp.eq.s32.totalorder %s28, 1
      %p65 = por %p63, %p64
      %p67 = scmp.ne.s32.totalorder %s50, %s66
      %p68 = scmp.eq.s32.totalorder %s28, 0
      %p69 = por %p67, %p68
      %s70 = ssub.s32 %s29, %s41
      %s71 = ssub.s32 %s30, %s37
      %s72 = sor.u32 %s70, %s71
      %p73 = scmp.eq.s32.totalorder %s72, 0
      %s75 = sadd.s32 %s74, 1
      %s76 = scalar_select %p73, %s74, %s75
      %p79 = pneg %p73
      %p80 = scmp.eq.s32.totalorder %s22, 1
      %p81 = por %p79, %p80
      %p82 = scmp.ne.s32.totalorder %s74, %s77
      %p83 = scmp.eq.s32.totalorder %s22, 0
      %p84 = por %p82, %p83
      %p85 = scmp.ne.s32.totalorder %s74, %s77
      %p86 = scmp.eq.s32.totalorder %s27, 1
      %p87 = por %p85, %p86
      %p88 = scmp.ne.s32.totalorder %s77, %s78
      %p89 = scmp.eq.s32.totalorder %s27, 0
      %p90 = por %p88, %p89
      %p91 = scmp.ne.s32.totalorder %s77, %s78
      %p92 = scmp.eq.s32.totalorder %s28, 1
      %p93 = por %p91, %p92
      %p95 = scmp.ne.s32.totalorder %s78, %s94
      %p96 = scmp.eq.s32.totalorder %s28, 0
      %p97 = por %p95, %p96
      %s99 = sadd.s32 %s98, 1
      %p102 = scmp.eq.s32.totalorder %s22, 1
      %p103 = scmp.ne.s32.totalorder %s98, %s100
      %p104 = scmp.eq.s32.totalorder %s22, 0
      %p105 = por %p103, %p104
      %p106 = scmp.ne.s32.totalorder %s98, %s100
      %p107 = scmp.eq.s32.totalorder %s27, 1
      %p108 = por %p106, %p107
      %p109 = scmp.ne.s32.totalorder %s100, %s101
      %p110 = scmp.eq.s32.totalorder %s27, 0
      %p111 = por %p109, %p110
      %p112 = scmp.ne.s32.totalorder %s100, %s101
      %p113 = scmp.eq.s32.totalorder %s28, 1
      %p114 = por %p112, %p113
      %p116 = scmp.ne.s32.totalorder %s101, %s115
      %p117 = scmp.eq.s32.totalorder %s28, 0
      %p118 = por %p116, %p117
      %s120 = sadd.s32 %s119, 1
      %p123 = scmp.eq.s32.totalorder %s22, 1
      %p124 = scmp.ne.s32.totalorder %s119, %s121
      %p125 = scmp.eq.s32.totalorder %s22, 0
      %p126 = por %p124, %p125
      %p127 = scmp.ne.s32.totalorder %s119, %s121
      %p128 = scmp.eq.s32.totalorder %s27, 1
      %p129 = por %p127, %p128
      %p130 = scmp.ne.s32.totalorder %s121, %s122
      %p131 = scmp.eq.s32.totalorder %s27, 0
      %p132 = por %p130, %p131
      %p133 = scmp.ne.s32.totalorder %s121, %s122
      %p134 = scmp.eq.s32.totalorder %s28, 1
      %p135 = por %p133, %p134
      %p137 = scmp.ne.s32.totalorder %s122, %s136
      %p138 = scmp.eq.s32.totalorder %s28, 0
      %p139 = por %p137, %p138
      %s141 = sadd.s32 %s140, 1
      %p144 = scmp.eq.s32.totalorder %s22, 1
      %p145 = scmp.ne.s32.totalorder %s140, %s142
      %p146 = scmp.eq.s32.totalorder %s22, 0
      %p147 = por %p145, %p146
      %p148 = scmp.ne.s32.totalorder %s140, %s142
      %p149 = scmp.eq.s32.totalorder %s27, 1
      %p150 = por %p148, %p149
      %p151 = scmp.ne.s32.totalorder %s142, %s143
      %p152 = scmp.eq.s32.totalorder %s27, 0
      %p153 = por %p151, %p152
      %p154 = scmp.ne.s32.totalorder %s142, %s143
      %p155 = scmp.eq.s32.totalorder %s28, 1
      %p156 = por %p154, %p155
      %p158 = scmp.ne.s32.totalorder %s143, %s157
      %p159 = scmp.eq.s32.totalorder %s28, 0
      %p160 = por %p158, %p159
      %s162 = sadd.s32 %s161, 1
      %p165 = scmp.eq.s32.totalorder %s22, 1
      %p166 = scmp.ne.s32.totalorder %s161, %s163
      %p167 = scmp.eq.s32.totalorder %s22, 0
      %p168 = por %p166, %p167
      %p169 = scmp.ne.s32.totalorder %s161, %s163
      %p170 = scmp.eq.s32.totalorder %s27, 1
      %p171 = por %p169, %p170
      %p172 = scmp.ne.s32.totalorder %s163, %s164
      %p173 = scmp.eq.s32.totalorder %s27, 0
      %p174 = por %p172, %p173
      %p175 = scmp.ne.s32.totalorder %s163, %s164
      %p176 = scmp.eq.s32.totalorder %s28, 1
      %p177 = por %p175, %p176
      %p179 = scmp.ne.s32.totalorder %s164, %s178
      %p180 = scmp.eq.s32.totalorder %s28, 0
      %p181 = por %p179, %p180
      %s182 = ssub.s32 %s29, %s41
      %s183 = ssub.s32 %s30, %s37
      %s184 = sor.u32 %s182, %s183
      %p185 = scmp.eq.s32.totalorder %s184, 0
      %s187 = sadd.s32 %s186, 1
      %s188 = scalar_select %p185, %s186, %s187
      %p191 = pneg %p185
      %p192 = scmp.eq.s32.totalorder %s22, 1
      %p193 = por %p191, %p192
      %p194 = scmp.ne.s32.totalorder %s186, %s189
      %p195 = scmp.eq.s32.totalorder %s22, 0
      %p196 = por %p194, %p195
      %p197 = scmp.ne.s32.totalorder %s186, %s189
      %p198 = scmp.eq.s32.totalorder %s27, 1
      %p199 = por %p197, %p198
      %p200 = scmp.ne.s32.totalorder %s189, %s190
      %p201 = scmp.eq.s32.totalorder %s27, 0
      %p202 = por %p200, %p201
      %p203 = scmp.ne.s32.totalorder %s189, %s190
      %p204 = scmp.eq.s32.totalorder %s28, 1
      %p205 = por %p203, %p204
      %p207 = scmp.ne.s32.totalorder %s190, %s206
      %p208 = scmp.eq.s32.totalorder %s28, 0
      %p209 = por %p207, %p208
      %s210 = ssub.s32 %s29, %s41
      %s211 = ssub.s32 %s30, %s37
      %s212 = sor.u32 %s210, %s211
      %p213 = scmp.eq.s32.totalorder %s212, 0
      %s215 = sadd.s32 %s214, 1
      %s216 = scalar_select %p213, %s214, %s215
      %p219 = pneg %p213
      %p220 = scmp.eq.s32.totalorder %s22, 1
      %p221 = por %p219, %p220
      %p222 = scmp.ne.s32.totalorder %s214, %s217
      %p223 = scmp.eq.s32.totalorder %s22, 0
      %p224 = por %p222, %p223
      %p225 = scmp.ne.s32.totalorder %s214, %s217
      %p226 = scmp.eq.s32.totalorder %s27, 1
      %p227 = por %p225, %p226
      %p228 = scmp.ne.s32.totalorder %s217, %s218
      %p229 = scmp.eq.s32.totalorder %s27, 0
      %p230 = por %p228, %p229
      %p231 = scmp.ne.s32.totalorder %s217, %s218
      %p232 = scmp.eq.s32.totalorder %s28, 1
      %p233 = por %p231, %p232
      %p235 = scmp.ne.s32.totalorder %s218, %s234
      %p236 = scmp.eq.s32.totalorder %s28, 0
      %p237 = por %p235, %p236
      %p238 = scmp.le.s32.totalorder 1, %s22
      %p239 = scmp.lt.s32.totalorder %s22, 3
      %p240 = pnand %p238, %p239
      %p241 = pneg %p240
      // Predicated region
      $region9: #{tpu_custom_call.1} parent=5 // pred_check
        _
      $region10: #{tpu_custom_call.1} parent=5 // pred_check_branch
        %243 = sbr.rel (%p240) target = $region12
      $region11: #{tpu_custom_call.1} parent=5 // pred_region
        %s244 = ssub.s32 %s22, 1
        // Predicated region
        $region13: #{tpu_custom_call.1} parent=11 // pred_check
          %p245 = pneg %p111
        $region14: #{tpu_custom_call.1} parent=11 // pred_check_branch
          %247 = sbr.rel (%p245) target = $region16
        $region15: #{tpu_custom_call.1} parent=11 // pred_region
          %249 = vsyncadd [#allocation3], 0
          %s250 = sshll.u32 %s2, 4
          %s251 = int_to_ptr.hbm [resolvable:$true] %s250
          %s252 = sshll.u32 [#allocation2], 4
          %s253 = int_to_ptr.vmem [resolvable:$true] %s252
          %258 = dma.hbm_to_vmem [thread:$0]  %s251, 512, %s253, [#allocation3], 128, 128, 8
        $region16: #{tpu_custom_call.1} parent=11 // pred_fallthru
          _
        // Predicated region
        $region17: #{tpu_custom_call.1} parent=11 // pred_check
          %p259 = pneg %p132
        $region18: #{tpu_custom_call.1} parent=11 // pred_check_branch
          %261 = sbr.rel (%p259) target = $region20
        $region19: #{tpu_custom_call.1} parent=11 // pred_region
          _
        $region20: #{tpu_custom_call.1} parent=11 // pred_fallthru
          _
        // Predicated region
        $region21: #{tpu_custom_call.1} parent=11 // pred_check
          %p262 = pneg %p153
        $region22: #{tpu_custom_call.1} parent=11 // pred_check_branch
          %264 = sbr.rel (%p262) target = $region24
        $region23: #{tpu_custom_call.1} parent=11 // pred_region
          %266 = vsyncadd [#allocation6], 0
          %s267 = sshll.u32 %s4, 4
          %s268 = int_to_ptr.hbm [resolvable:$true] %s267
          %s269 = sshll.u32 [#allocation5], 4
          %s270 = int_to_ptr.vmem [resolvable:$true] %s269
          %275 = dma.hbm_to_vmem [thread:$0]  %s268, 512, %s270, [#allocation6], 128, 128, 8
        $region24: #{tpu_custom_call.1} parent=11 // pred_fallthru
          _
        // Predicated region
        $region25: #{tpu_custom_call.1} parent=11 // pred_check
          %p276 = pneg %p174
        $region26: #{tpu_custom_call.1} parent=11 // pred_check_branch
          %278 = sbr.rel (%p276) target = $region28
        $region27: #{tpu_custom_call.1} parent=11 // pred_region
          _
        $region28: #{tpu_custom_call.1} parent=11 // pred_fallthru
          _
      $region12: #{tpu_custom_call.1} parent=5 // pred_fallthru
        _
      %p279 = scmp.lt.s32.totalorder %s22, 2
      // Predicated region
      $region29: #{tpu_custom_call.1} parent=5 // pred_check
        %p280 = pneg %p279
      $region30: #{tpu_custom_call.1} parent=5 // pred_check_branch
        %282 = sbr.rel (%p280) target = $region32
      $region31: #{tpu_custom_call.1} parent=5 // pred_region
        // Predicated region
        $region33: #{tpu_custom_call.1} parent=31 // pred_check
          %p283 = pneg %p56
        $region34: #{tpu_custom_call.1} parent=31 // pred_check_branch
          %285 = sbr.rel (%p283) target = $region36
        $region35: #{tpu_custom_call.1} parent=31 // pred_region
          %p286 = scmp.lt.s32.totalorder %s29, 1
          %s287 = scalar_select %p286, %s29, 1
          %p288 = scmp.lt.s32.totalorder %s30, 0
          %s289 = scalar_select %p288, %s30, 0
          %s290 = sadd.s32 %s289, %s287
          %s291 = smul.addr %s290, 8
          %s292 = scalar_lea.vmem %s0, %s291
        $region36: #{tpu_custom_call.1} parent=31 // pred_fallthru
          _
        // Predicated region
        $region37: #{tpu_custom_call.1} parent=31 // pred_check
          %p293 = pneg %p84
        $region38: #{tpu_custom_call.1} parent=31 // pred_check_branch
          %295 = sbr.rel (%p293) target = $region40
        $region39: #{tpu_custom_call.1} parent=31 // pred_region
          %p296 = scmp.lt.s32.totalorder %s29, 1
          %s297 = scalar_select %p296, %s29, 1
          %p298 = scmp.lt.s32.totalorder %s30, 0
          %s299 = scalar_select %p298, %s30, 0
          %s300 = sadd.s32 %s299, %s297
          %s301 = smul.addr %s300, 8
          %s302 = scalar_lea.vmem %s1, %s301
        $region40: #{tpu_custom_call.1} parent=31 // pred_fallthru
          _
      $region32: #{tpu_custom_call.1} parent=5 // pred_fallthru
        _
      %p303 = scmp.le.s32.totalorder 1, %s22
      %p304 = scmp.lt.s32.totalorder %s22, 3
      %p305 = pnand %p303, %p304
      %p306 = pneg %p305
      // Predicated region
      $region41: #{tpu_custom_call.1} parent=5 // pred_check
        _
      $region42: #{tpu_custom_call.1} parent=5 // pred_check_branch
        %308 = sbr.rel (%p305) target = $region44
      $region43: #{tpu_custom_call.1} parent=5 // pred_region
        %s309 = ssub.s32 %s22, 1
        // Predicated region
        $region45: #{tpu_custom_call.1} parent=43 // pred_check
          %p310 = pneg %p111
        $region46: #{tpu_custom_call.1} parent=43 // pred_check_branch
          %312 = sbr.rel (%p310) target = $region48
        $region47: #{tpu_custom_call.1} parent=43 // pred_region
          %314 = dma.done [#allocation3], 512
        $region48: #{tpu_custom_call.1} parent=43 // pred_fallthru
          _
        // Predicated region
        $region49: #{tpu_custom_call.1} parent=43 // pred_check
          %p315 = pneg %p153
        $region50: #{tpu_custom_call.1} parent=43 // pred_check_branch
          %317 = sbr.rel (%p315) target = $region52
        $region51: #{tpu_custom_call.1} parent=43 // pred_region
          %319 = dma.done [#allocation6], 512
        $region52: #{tpu_custom_call.1} parent=43 // pred_fallthru
          _
        %p320 = scmp.lt.s32.totalorder %s31, 1
        %s321 = scalar_select %p320, %s31, 1
        %p322 = scmp.lt.s32.totalorder %s32, 0
        %s323 = scalar_select %p322, %s32, 0
        %s324 = sadd.s32 %s323, %s321
        %s325 = smul.addr %s324, 8
        %s326 = scalar_lea.vmem %s0, %s325
        %p327 = pneg %p62
        %p328 = pneg %p59
        %p329 = scmp.lt.s32.totalorder %s31, 1
        %s330 = scalar_select %p329, %s31, 1
        %p331 = scmp.lt.s32.totalorder %s32, 0
        %s332 = scalar_select %p331, %s32, 0
        %s333 = sadd.s32 %s332, %s330
        %s334 = smul.addr %s333, 8
        %s335 = scalar_lea.vmem %s1, %s334
        %p336 = pneg %p90
        %p337 = pneg %p87
        %p338 = pneg %p111
        %p339 = pneg %p108
        %p340 = pneg %p132
        %p341 = pneg %p129
        %p342 = pneg %p153
        %p343 = pneg %p150
        %p344 = pneg %p174
        %p345 = pneg %p171
        %p346 = pneg %p202
        %p347 = pneg %p199
        %s348 = sand.u32 %s189, 1
        %s349 = scalar_lea.sflag [#allocation4], %s348
        %s350 = sand.u32 %s189, 1
        %s351 = smul.addr %s350, 8
        %s352 = scalar_lea.vmem [#allocation7], %s351
        %p353 = pneg %p230
        %p354 = pneg %p227
        %s355 = sand.u32 %s217, 1
        %s356 = scalar_lea.sflag [#allocation9], %s355
        %s357 = sand.u32 %s217, 1
        %s358 = smul.addr %s357, 8
        %s359 = scalar_lea.vmem [#allocation8], %s358
        %p360 = scmp.lt.s32.totalorder %s31, 1
        %s361 = scalar_select %p360, %s31, 1
        %p362 = scmp.lt.s32.totalorder %s32, 0
        %s363 = scalar_select %p362, %s32, 0
        %s364 = sadd.s32 %s363, %s361
        %s365 = smul.addr %s364, 8
        %s366 = scalar_lea.vmem %s0, %s365
        %p367 = scmp.lt.s32.totalorder %s31, 1
        %s368 = scalar_select %p367, %s31, 1
        %p369 = scmp.lt.s32.totalorder %s32, 0
        %s370 = scalar_select %p369, %s32, 0
        %s371 = sadd.s32 %s370, %s368
        %s372 = smul.addr %s371, 8
        %s373 = scalar_lea.vmem %s1, %s372
        %v374 = vld [vmem:[%s366] sm:$0xff]
        %v375 = vld [vmem:[#allocation2] sm:$0xff]
        %v376 = vld [vmem:[#allocation2 + $0x8] sm:$0xff]
        %v377 = vld [vmem:[#allocation2 + $0x10] sm:$0xff]
        %v378 = vld [vmem:[#allocation2 + $0x18] sm:$0xff]
        %v379 = vld [vmem:[%s3] sm:$0x1]
        %v381 = vperm.slane %v379, 0
        %vm383 = vcmask 261120
        %v385 = vsel %vm383, %v374, 0
        %387 = vmatpush.msra.mxu0 0.0
        %388 = vmatpush.msra.mxu0 0.0
        %389 = vmatpush.msra.mxu0 0.0
        %390 = vmatpush.msra.mxu0 0.0
        %391 = vmatpush.msra.mxu0 0.0
        %392 = vmatpush.msra.mxu0 0.0
        %393 = vmatpush.msra.mxu0 0.0
        %394 = vmatpush.msra.mxu0 0.0
        %395 = vmatpush.msra.mxu0 0.0
        %396 = vmatpush.msra.mxu0 0.0
        %397 = vmatpush.msra.mxu0 0.0
        %398 = vmatpush.msra.mxu0 0.0
        %399 = vmatpush.msra.mxu0 %v378
        %400 = vmatpush.msra.mxu0 %v377
        %401 = vmatpush.msra.mxu0 %v376
        %402 = vmatpush.msra.mxu0 %v375
        %403 = vmatmul.f32.gmra.mxu0 %v385
        %v404 = vpop.f32.mrf.mxu0
        %v405 = vadd.f32 %v381, %v404
        %406 = vdwg.mxu0
        %v407 = vmul.f32 %v405, 0.088388346
        %v408 = vld [vmem:[#allocation5] sm:$0xff]
        %v409 = vld [vmem:[#allocation5 + $0x8] sm:$0xff]
        %v410 = vld [vmem:[#allocation5 + $0x10] sm:$0xff]
        %v411 = vld [vmem:[#allocation5 + $0x18] sm:$0xff]
        %v412 = vld [vmem:[%s5] sm:$0x1]
        %v414 = vperm.slane %v412, 0
        %416 = vmatpush.msra.mxu0 0.0
        %417 = vmatpush.msra.mxu0 0.0
        %418 = vmatpush.msra.mxu0 0.0
        %419 = vmatpush.msra.mxu0 0.0
        %420 = vmatpush.msra.mxu0 0.0
        %421 = vmatpush.msra.mxu0 0.0
        %422 = vmatpush.msra.mxu0 0.0
        %423 = vmatpush.msra.mxu0 0.0
        %424 = vmatpush.msra.mxu0 0.0
        %425 = vmatpush.msra.mxu0 0.0
        %426 = vmatpush.msra.mxu0 0.0
        %427 = vmatpush.msra.mxu0 0.0
        %428 = vmatpush.msra.mxu0 %v411
        %429 = vmatpush.msra.mxu0 %v410
        %430 = vmatpush.msra.mxu0 %v409
        %431 = vmatpush.msra.mxu0 %v408
        %432 = vmatmul.f32.gmra.mxu0 %v385
        %v433 = vpop.f32.mrf.mxu0
        %v434 = vadd.f32 %v414, %v433
        %435 = vdwg.mxu0
        %v436 = vld [vmem:[%s373] sm:$0xff]
        %438 = vset.pattern.permute.xlu0 0
        %439 = vperm.xlu0 %438, %v436
        %v440 = vpop.permute.xlu0 %439
        %v442 = vmul.f32 %v407, %v440
        %v443 = vmul.f32 %v434, %v440
        %444 = vst.msk [vmem:[%s352] sm:$0xff] %vm383, %v442
        %445 = vst.msk [vmem:[%s359] sm:$0xff] %vm383, %v443
        %s446 = sand.u32 %s189, 1
        %s447 = scalar_lea.sflag [#allocation4], %s446
        %s448 = sand.u32 %s189, 1
        %s449 = smul.addr %s448, 8
        %s450 = scalar_lea.vmem [#allocation7], %s449
        %s451 = sand.u32 %s217, 1
        %s452 = scalar_lea.sflag [#allocation9], %s451
        %s453 = sand.u32 %s217, 1
        %s454 = smul.addr %s453, 8
        %s455 = scalar_lea.vmem [#allocation8], %s454
        // Predicated region
        $region53: #{tpu_custom_call.1} parent=43 // pred_check
          %p456 = pneg %p199
        $region54: #{tpu_custom_call.1} parent=43 // pred_check_branch
          %458 = sbr.rel (%p456) target = $region56
        $region55: #{tpu_custom_call.1} parent=43 // pred_region
          %460 = vsyncadd %s447, 0
          %s461 = sadd.s32 %s32, %s31
          %s462 = smul.addr %s461, 8
          %s463 = scalar_lea.hbm %s6, %s462
          %s465 = sshll.u32 %s450, 4
          %s466 = int_to_ptr.vmem [resolvable:$true] %s465
          %s467 = sshll.u32 %s463, 4
          %s468 = int_to_ptr.hbm [resolvable:$true] %s467
          %470 = dma.vmem_to_hbm [thread:$0]  %s466, 128, %s468, %s447
        $region56: #{tpu_custom_call.1} parent=43 // pred_fallthru
          _
        // Predicated region
        $region57: #{tpu_custom_call.1} parent=43 // pred_check
          %p471 = pneg %p227
        $region58: #{tpu_custom_call.1} parent=43 // pred_check_branch
          %473 = sbr.rel (%p471) target = $region60
        $region59: #{tpu_custom_call.1} parent=43 // pred_region
          %475 = vsyncadd %s452, 0
          %s476 = sadd.s32 %s32, %s31
          %s477 = smul.addr %s476, 8
          %s478 = scalar_lea.hbm %s7, %s477
          %s480 = sshll.u32 %s455, 4
          %s481 = int_to_ptr.vmem [resolvable:$true] %s480
          %s482 = sshll.u32 %s478, 4
          %s483 = int_to_ptr.hbm [resolvable:$true] %s482
          %485 = dma.vmem_to_hbm [thread:$0]  %s481, 128, %s483, %s452
        $region60: #{tpu_custom_call.1} parent=43 // pred_fallthru
          _
      $region44: #{tpu_custom_call.1} parent=5 // pred_fallthru
        _
      %p486 = scmp.le.s32.totalorder 2, %s22
      // Predicated region
      $region61: #{tpu_custom_call.1} parent=5 // pred_check
        %p487 = pneg %p486
      $region62: #{tpu_custom_call.1} parent=5 // pred_check_branch
        %489 = sbr.rel (%p487) target = $region64
      $region63: #{tpu_custom_call.1} parent=5 // pred_region
        %s490 = ssub.s32 %s22, 2
        // Predicated region
        $region65: #{tpu_custom_call.1} parent=63 // pred_check
          %p491 = pneg %p205
        $region66: #{tpu_custom_call.1} parent=63 // pred_check_branch
          %493 = sbr.rel (%p491) target = $region68
        $region67: #{tpu_custom_call.1} parent=63 // pred_region
          %s494 = sand.u32 %s190, 1
          %s495 = scalar_lea.sflag [#allocation4], %s494
          %s496 = sand.u32 %s190, 1
          %s497 = smul.addr %s496, 8
          %s498 = scalar_lea.vmem [#allocation7], %s497
          %500 = dma.done %s495, 128
        $region68: #{tpu_custom_call.1} parent=63 // pred_fallthru
          _
        // Predicated region
        $region69: #{tpu_custom_call.1} parent=63 // pred_check
          %p501 = pneg %p233
        $region70: #{tpu_custom_call.1} parent=63 // pred_check_branch
          %503 = sbr.rel (%p501) target = $region72
        $region71: #{tpu_custom_call.1} parent=63 // pred_region
          %s504 = sand.u32 %s218, 1
          %s505 = scalar_lea.sflag [#allocation9], %s504
          %s506 = sand.u32 %s218, 1
          %s507 = smul.addr %s506, 8
          %s508 = scalar_lea.vmem [#allocation8], %s507
          %510 = dma.done %s505, 128
        $region72: #{tpu_custom_call.1} parent=63 // pred_fallthru
          _
      $region64: #{tpu_custom_call.1} parent=5 // pred_fallthru
        _
    $region6: #{tpu_custom_call.1} parent=1 // loop_footer
      %s26 = sadd.s32 1, %s22
    $region7: #{tpu_custom_call.1} parent=1 // loop_footer_branch
      %21 = sbr.rel target = $region3
    $region8: #{tpu_custom_call.1} parent=1 // loop_exit
      _
    %511 = vsyncpa [#allocation3], 1
    %s512 = scalar_lea.sflag [#allocation3], 1
    %513 = vsyncpa %s512, 1
    %514 = vsyncpa [#allocation6], 1
    %515 = vsyncpa [#allocation4], 1
    %s516 = scalar_lea.sflag [#allocation4], 1
    %517 = vsyncpa %s516, 1
    %518 = vsyncpa [#allocation9], 1
    %s519 = scalar_lea.sflag [#allocation9], 1
    %520 = vsyncpa %s519, 1

</llo_original>
